<compile_context>
chip_gen: v6e
topology: v6e:2x2x1
jax: 0.10.0
libtpu: 0.0.40
codegen_flags: <defaults>
</compile_context>

<pallas_src>
import functools

import jax
import jax.numpy as jnp
from jax.experimental import pallas as pl
from jax.experimental.pallas import tpu as pltpu

D = 300                  # embedding dim (Conv1d in_channels)
C = 100                  # Conv1d out_channels
KS = (3, 4, 5)           # kernel sizes of convs1 / convs2 (padding = K - 2)
KMAX = max(KS)
PAD_MAX = KMAX - 2       # = 3, common left-pad for the fused gated convs
NK = len(KS)
NUM_CLASSES = 3          # args.stage == 2

DP = 384                 # D padded to a lane multiple (3 * 128)
CP = 128                 # C padded to one full lane register
NTOT = sum(KS) * 2 * CP  # all taps of convs1 + convs2 packed into one weight


def _round_up(x, m):
    return (x + m - 1) // m * m


# ----------------------------- kernels --------------------------------------

def _aspect_kernel(xa_ref, w3_ref, b3_ref, wfc_ref, bfc_ref, o_ref, *, La):
    """relu(convs3(aspect)) -> max-pool(time) -> fc_aspect, one batch tile."""
    bt, Lap, dp = xa_ref.shape
    rows = bt * Lap
    x2 = xa_ref[...].reshape(rows, dp)                                    # bf16
    # One lane-dense matmul for all 3 taps: (rows, DP) @ (DP, 3*CP).
    y = jnp.dot(x2, w3_ref[...], preferred_element_type=jnp.float32)
    acc = y[:, :CP]
    for k in range(1, 3):
        # Tap alignment on the small f32 result (XLU roll), not on the input.
        acc = acc + pltpu.roll(y[:, k * CP:(k + 1) * CP], shift=rows - k, axis=0)
    a = jnp.maximum(acc.reshape(bt, Lap, CP) + b3_ref[...][None, :, :], 0.0)
    tid = jax.lax.broadcasted_iota(jnp.int32, (bt, Lap, 1), 1)
    a = jnp.where(tid < La, a, -jnp.inf)        # mask alignment-padding rows
    v = jnp.max(a, axis=1)                      # (bt, CP) == aspect_v (padded)
    proj = jnp.dot(v.astype(wfc_ref.dtype), wfc_ref[...],
                   preferred_element_type=jnp.float32) + bfc_ref[...]
    o_ref[...] = proj[:, None, :]               # (bt, 1, CP)


def _gated_kernel(xf_ref, asp_ref, w_ref, b_ref, o_ref, *, L):
    """All six gated convs (K=3,4,5) + time max-pool for one batch tile."""
    bt, Lp, dp = xf_ref.shape
    rows = bt * Lp
    x2 = xf_ref[...].reshape(rows, dp)                                    # bf16
    # Single MXU matmul for every tap of every kernel size / both branches.
    y = jnp.dot(x2, w_ref[...], preferred_element_type=jnp.float32)      # (rows, NTOT)
    asp = asp_ref[...]                                                    # (bt, 1, CP)
    biases = b_ref[...]                                                   # (NK, 2*CP)
    col = 0
    pooled = []
    for ki, K in enumerate(KS):
        acc = jnp.zeros((rows, 2 * CP), jnp.float32)
        for k in range(K):
            off = (KMAX - K) + k            # tap offset in the common padding
            yk = y[:, col:col + 2 * CP]     # static 256-wide lane slice
            col += 2 * CP
            if off:
                yk = pltpu.roll(yk, shift=rows - off, axis=0)
            acc = acc + yk
        z = acc.reshape(bt, Lp, 2 * CP) + biases[ki:ki + 1].reshape(1, 1, 2 * CP)
        g = jnp.tanh(z[..., :CP]) * jnp.maximum(z[..., CP:] + asp, 0.0)
        tid = jax.lax.broadcasted_iota(jnp.int32, (bt, Lp, 1), 1)
        g = jnp.where(tid < L + K - 3, g, -jnp.inf)   # mask invalid time rows
        pooled.append(jnp.max(g, axis=1))             # (bt, CP)
    o_ref[...] = jnp.concatenate(pooled, axis=-1)[:, None, :]   # (bt, 1, NK*CP)


# ----------------------------- wrappers --------------------------------------

def _aspect_call(asp_pad, packed, *, La, btile):
    Bp, Lap, dp = asp_pad.shape
    nb = Bp // btile
    return pl.pallas_call(
        functools.partial(_aspect_kernel, La=La),
        out_shape=jax.ShapeDtypeStruct((Bp, 1, CP), jnp.float32),
        grid=(nb,),
        in_specs=[
            pl.BlockSpec((btile, Lap, dp), lambda i: (i, 0, 0)),
            pl.BlockSpec((dp, 3 * CP), lambda i: (0, 0)),
            pl.BlockSpec((1, CP), lambda i: (0, 0)),
            pl.BlockSpec((CP, CP), lambda i: (0, 0)),
            pl.BlockSpec((1, CP), lambda i: (0, 0)),
        ],
        out_specs=pl.BlockSpec((btile, 1, CP), lambda i: (i, 0, 0)),
        compiler_params=pltpu.CompilerParams(dimension_semantics=("parallel",)),
    )(asp_pad, packed["w3"], packed["b3"], packed["wfc"], packed["bfc"])


def _gated_call(feat_pad, asp_proj, packed, *, L, btile):
    Bp, Lp, dp = feat_pad.shape
    nb = Bp // btile
    return pl.pallas_call(
        functools.partial(_gated_kernel, L=L),
        out_shape=jax.ShapeDtypeStruct((Bp, 1, NK * CP), jnp.float32),
        grid=(nb,),
        in_specs=[
            pl.BlockSpec((btile, Lp, dp), lambda i: (i, 0, 0)),
            pl.BlockSpec((btile, 1, CP), lambda i: (i, 0, 0)),
            pl.BlockSpec((dp, NTOT), lambda i: (0, 0)),      # constant weight block
            pl.BlockSpec((NK, 2 * CP), lambda i: (0, 0)),
        ],
        out_specs=pl.BlockSpec((btile, 1, NK * CP), lambda i: (i, 0, 0)),
        compiler_params=pltpu.CompilerParams(dimension_semantics=("parallel",)),
    )(feat_pad, asp_proj, packed["w_gate"], packed["b_gate"])


def pack_params(raw):
    """Pad channels 100->128 / 300->384, fuse conv weights, cast to bf16."""
    bf16 = jnp.bfloat16

    def pad_dc(w):   # (K, D, C) -> (K, DP, CP)
        return jnp.pad(w, ((0, 0), (0, DP - D), (0, CP - C)))

    def pad_c(b):    # (C,) -> (CP,)
        return jnp.pad(b, (0, CP - C))

    emb_p = jnp.pad(raw["emb"], ((0, 0), (0, DP - D))).astype(bf16)

    cols, bias_rows = [], []
    for K in KS:
        w1 = pad_dc(raw["w1"][K]).astype(bf16)
        w2 = pad_dc(raw["w2"][K]).astype(bf16)
        for k in range(K):
            cols.append(jnp.concatenate([w1[k], w2[k]], axis=1))   # (DP, 2*CP)
        bias_rows.append(jnp.concatenate([pad_c(raw["b1"][K]), pad_c(raw["b2"][K])]))
    w_gate = jnp.concatenate(cols, axis=1)                         # (DP, NTOT) bf16
    b_gate = jnp.stack(bias_rows).astype(jnp.float32)              # (NK, 2*CP)

    w3 = pad_dc(raw["w3"]).astype(bf16)                            # (3, DP, CP)
    w3_p = jnp.concatenate([w3[k] for k in range(3)], axis=1)      # (DP, 3*CP)
    b3_p = pad_c(raw["b3"]).astype(jnp.float32)[None, :]           # (1, CP)

    wfc_p = jnp.pad(raw["wfc"], ((0, CP - C), (0, CP - C))).astype(bf16)
    bfc_p = pad_c(raw["bfc"]).astype(jnp.float32)[None, :]

    return dict(emb=emb_p, w_gate=w_gate, b_gate=b_gate, w3=w3_p, b3=b3_p,
                wfc=wfc_p, bfc=bfc_p, wfc2=raw["wfc2"], bfc2=raw["bfc2"])


def gcae_pre_forward(feature_tok, aspect_tok, packed):
    B, L = feature_tok.shape
    La = aspect_tok.shape[1]

    # TODO(synk): the embedding gather could be fused into the conv kernel via
    # PrefetchScalarGridSpec (prefetch token ids) to avoid one HBM round trip.
    feat = packed["emb"][feature_tok]      # (B, L, DP)  bf16
    asp = packed["emb"][aspect_tok]        # (B, La, DP) bf16

    # Batch tile: fold several sequences into the matmul M dim, but keep >= 2
    # "parallel" grid steps so both v7x TensorCores are used.
    btile = max(1, min(8, B // 2)) if B > 1 else 1
    Bp = _round_up(B, btile)

    # Gated convs share a common left pad of KMAX-2 = 3; right pad up to a
    # sublane multiple (padded rows masked out of the max-pool in-kernel).
    Lp = _round_up(L + 2 * PAD_MAX, 8)
    feat_p = jnp.pad(feat, ((0, Bp - B), (PAD_MAX, Lp - L - PAD_MAX), (0, 0)))
    # Aspect conv (K=3, padding=1): left pad 1, right pad to a sublane multiple.
    Lap = _round_up(La + 2, 8)
    asp_p = jnp.pad(asp, ((0, Bp - B), (1, Lap - La - 1), (0, 0)))

    asp_proj = _aspect_call(asp_p, packed, La=La, btile=btile)          # (Bp,1,CP)
    pooled = _gated_call(feat_p, asp_proj, packed, L=L, btile=btile)    # (Bp,1,NK*CP)

    x = pooled[:B, 0, :].reshape(B, NK, CP)[:, :, :C].reshape(B, NK * C)  # (B, 300)
    # self.dropout: eval-mode identity.
    # Final 3-wide head left to XLA (a pallas_call would be launch-overhead).
    return x @ packed["wfc2"] + packed["bfc2"]


# --------------------------- pure-JAX reference -------------------------------

def _ref_forward(feature_tok, aspect_tok, raw):
    bf16 = jnp.bfloat16
    feat = raw["emb"][feature_tok].astype(bf16)
    asp = raw["emb"][aspect_tok].astype(bf16)

    def conv1d(x, w, b, pad):            # x: (B, L, D), w: (K, D, C)
        xp = jnp.pad(x, ((0, 0), (pad, pad), (0, 0)))
        K = w.shape[0]
        Lo = xp.shape[1] - K + 1
        acc = sum(jnp.einsum("bld,dc->blc", xp[:, k:k + Lo, :], w[k].astype(bf16),
                             preferred_element_type=jnp.float32) for k in range(K))
        return acc + b[None, None, :]

    aa = jax.nn.relu(conv1d(asp, raw["w3"], raw["b3"], 1))
    aspect_v = jnp.max(aa, axis=1)                                   # (B, C)
    asp_proj = jnp.dot(aspect_v.astype(bf16), raw["wfc"].astype(bf16),
                       preferred_element_type=jnp.float32) + raw["bfc"]

    xs = []
    for K in KS:
        x = jnp.tanh(conv1d(feat, raw["w1"][K], raw["b1"][K], K - 2))
        y = jax.nn.relu(conv1d(feat, raw["w2"][K], raw["b2"][K], K - 2)
                        + asp_proj[:, None, :])
        xs.append(jnp.max(x * y, axis=1))
    x = jnp.concatenate(xs, axis=-1)                                 # (B, 300)
    return x @ raw["wfc2"] + raw["bfc2"]


# -------------------------------- main ----------------------------------------

if __name__ == "__main__":
    B, L, La, VOCAB = 2, 16, 8, 64

    key = jax.random.PRNGKey(0)
    ks = jax.random.split(key, 24)

    feature_tok = jax.random.randint(ks[0], (B, L), 1, VOCAB, dtype=jnp.int32)
    aspect_tok = jax.random.randint(ks[1], (B, La), 1, VOCAB, dtype=jnp.int32)

    def rnd(k, shape, scale=0.05):
        return scale * jax.random.normal(k, shape, jnp.float32)

    raw = {
        "emb": rnd(ks[2], (VOCAB, D), 1.0),
        "w3": rnd(ks[3], (3, D, C)), "b3": rnd(ks[4], (C,)),
        "w1": {K: rnd(ks[5 + i], (K, D, C)) for i, K in enumerate(KS)},
        "b1": {K: rnd(ks[8 + i], (C,)) for i, K in enumerate(KS)},
        "w2": {K: rnd(ks[11 + i], (K, D, C)) for i, K in enumerate(KS)},
        "b2": {K: rnd(ks[14 + i], (C,)) for i, K in enumerate(KS)},
        "wfc": rnd(ks[17], (C, C)), "bfc": rnd(ks[18], (C,)),
        "wfc2": rnd(ks[19], (NK * C, NUM_CLASSES)), "bfc2": rnd(ks[20], (NUM_CLASSES,)),
    }

    packed = pack_params(raw)
    logits = gcae_pre_forward(feature_tok, aspect_tok, packed)
    logits = jax.block_until_ready(logits)

    ref = _ref_forward(feature_tok, aspect_tok, raw)
    assert logits.shape == (B, NUM_CLASSES)
    assert jnp.allclose(logits, ref, atol=2e-3, rtol=2e-3), (logits, ref)

    print("KERNEL_OK")
</pallas_src>

<mosaic_0001>
module attributes {stable_mosaic.version = 11 : i64} {
  func.func @_aspect_kernel(%arg0: i32, %arg1: memref<1x16x384xbf16, #tpu.memory_space<vmem>>, %arg2: memref<384x384xbf16, #tpu.memory_space<vmem>>, %arg3: memref<1x128xf32, #tpu.memory_space<vmem>>, %arg4: memref<128x128xbf16, #tpu.memory_space<vmem>>, %arg5: memref<1x128xf32, #tpu.memory_space<vmem>>, %arg6: memref<1x1x128xf32, #tpu.memory_space<vmem>>) attributes {dimension_semantics = [#tpu.dimension_semantics<parallel>], iteration_bounds = array<i64: 2>, scalar_prefetch = 0 : i64, scratch_operands = 0 : i64, tpu.core_type = #tpu.core_type<tc>, window_params = [{transform_indices = @transform_0, window_bounds = array<i64: 1, 16, 384>}, {pipeline_mode = #tpu.pipeline_mode<synchronous>, transform_indices = @transform_1, window_bounds = array<i64: 384, 384>}, {pipeline_mode = #tpu.pipeline_mode<synchronous>, transform_indices = @transform_2, window_bounds = array<i64: 1, 128>}, {pipeline_mode = #tpu.pipeline_mode<synchronous>, transform_indices = @transform_3, window_bounds = array<i64: 128, 128>}, {pipeline_mode = #tpu.pipeline_mode<synchronous>, transform_indices = @transform_4, window_bounds = array<i64: 1, 128>}, {transform_indices = @transform_5, window_bounds = array<i64: 1, 1, 128>}]} {
    %c0 = arith.constant 0 : index
    %c0_0 = arith.constant 0 : index
    %c0_1 = arith.constant 0 : index
    %0 = vector.load %arg1[%c0, %c0_0, %c0_1] : memref<1x16x384xbf16, #tpu.memory_space<vmem>>, vector<1x16x384xbf16>
    %1 = vector.shape_cast %0 : vector<1x16x384xbf16> to vector<16x384xbf16>
    %c0_2 = arith.constant 0 : index
    %c0_3 = arith.constant 0 : index
    %2 = vector.load %arg2[%c0_2, %c0_3] : memref<384x384xbf16, #tpu.memory_space<vmem>>, vector<384x384xbf16>
    %cst = arith.constant dense<0.000000e+00> : vector<16x384xf32>
    %3 = tpu.matmul %1, %2, %cst {dimension_numbers = #tpu.dot_dimension_numbers<[1], [0], [0], [1], [0, 0, 1, 1], [], []>} : vector<16x384xbf16>, vector<384x384xbf16>, vector<16x384xf32> -> vector<16x384xf32>
    %4 = vector.extract_strided_slice %3 {offsets = [0, 0], sizes = [16, 128], strides = [1, 1]} : vector<16x384xf32> to vector<16x128xf32>
    %5 = vector.extract_strided_slice %3 {offsets = [0, 128], sizes = [16, 128], strides = [1, 1]} : vector<16x384xf32> to vector<16x128xf32>
    %c15_i32 = arith.constant 15 : i32
    %6 = tpu.dynamic_rotate %5 by %c15_i32 dim 0 : vector<16x128xf32>, i32 -> vector<16x128xf32>
    %7 = arith.addf %4, %6 : vector<16x128xf32>
    %8 = vector.extract_strided_slice %3 {offsets = [0, 256], sizes = [16, 128], strides = [1, 1]} : vector<16x384xf32> to vector<16x128xf32>
    %c14_i32 = arith.constant 14 : i32
    %9 = tpu.dynamic_rotate %8 by %c14_i32 dim 0 : vector<16x128xf32>, i32 -> vector<16x128xf32>
    %10 = arith.addf %7, %9 : vector<16x128xf32>
    %11 = vector.shape_cast %10 : vector<16x128xf32> to vector<1x16x128xf32>
    %c0_4 = arith.constant 0 : index
    %c0_5 = arith.constant 0 : index
    %12 = vector.load %arg3[%c0_4, %c0_5] : memref<1x128xf32, #tpu.memory_space<vmem>>, vector<1x128xf32>
    %13 = vector.shape_cast %12 : vector<1x128xf32> to vector<1x1x128xf32>
    %14 = vector.broadcast %13 : vector<1x1x128xf32> to vector<1x16x128xf32>
    %15 = arith.addf %11, %14 : vector<1x16x128xf32>
    %cst_6 = arith.constant 0.000000e+00 : f32
    %16 = vector.broadcast %cst_6 : f32 to vector<1x16x128xf32>
    %17 = arith.maximumf %15, %16 : vector<1x16x128xf32>
    %18 = tpu.iota {dimensions = array<i32: 1>} : vector<1x16x1xi32>
    %c8_i32 = arith.constant 8 : i32
    %19 = vector.broadcast %c8_i32 : i32 to vector<1x16x1xi32>
    %20 = arith.cmpi slt, %18, %19 : vector<1x16x1xi32>
    %cst_7 = arith.constant 0xFF800000 : f32
    %21 = vector.shape_cast %20 : vector<1x16x1xi1> to vector<1x16x1xi1>
    %22 = vector.broadcast %21 : vector<1x16x1xi1> to vector<1x16x128xi1>
    %23 = vector.broadcast %cst_7 : f32 to vector<1x16x128xf32>
    %24 = arith.select %22, %17, %23 : vector<1x16x128xi1>, vector<1x16x128xf32>
    %cst_8 = arith.constant dense<0xFF800000> : vector<1x128xf32>
    %25 = vector.multi_reduction <maximumf>, %24, %cst_8 [1] : vector<1x16x128xf32> to vector<1x128xf32>
    %26 = arith.truncf %25 : vector<1x128xf32> to vector<1x128xbf16>
    %c0_9 = arith.constant 0 : index
    %c0_10 = arith.constant 0 : index
    %27 = vector.load %arg4[%c0_9, %c0_10] : memref<128x128xbf16, #tpu.memory_space<vmem>>, vector<128x128xbf16>
    %cst_11 = arith.constant dense<0.000000e+00> : vector<1x128xf32>
    %28 = tpu.matmul %26, %27, %cst_11 {dimension_numbers = #tpu.dot_dimension_numbers<[1], [0], [0], [1], [0, 0, 1, 1], [], []>} : vector<1x128xbf16>, vector<128x128xbf16>, vector<1x128xf32> -> vector<1x128xf32>
    %c0_12 = arith.constant 0 : index
    %c0_13 = arith.constant 0 : index
    %29 = vector.load %arg5[%c0_12, %c0_13] : memref<1x128xf32, #tpu.memory_space<vmem>>, vector<1x128xf32>
    %30 = arith.addf %28, %29 : vector<1x128xf32>
    %31 = vector.shape_cast %30 : vector<1x128xf32> to vector<1x1x128xf32>
    %c0_14 = arith.constant 0 : index
    %c0_15 = arith.constant 0 : index
    %c0_16 = arith.constant 0 : index
    %32 = vector.load %arg6[%c0_14, %c0_15, %c0_16] : memref<1x1x128xf32, #tpu.memory_space<vmem>>, vector<1x1x128xf32>
    tpu.vector_store %arg6[%c0_14, %c0_15, %c0_16], %31 {strides = array<i32>} : memref<1x1x128xf32, #tpu.memory_space<vmem>>, vector<1x1x128xf32>,
    return
  }
  func.func @transform_0(%arg0: i32) -> (i32, i32, i32) {
    %c0_i32 = arith.constant 0 : i32
    %c0_i32_0 = arith.constant 0 : i32
    %c0_i32_1 = arith.constant 0 : i32
    return %arg0, %c0_i32, %c0_i32_0 : i32, i32, i32
  }
  func.func @transform_1(%arg0: i32) -> (i32, i32) {
    %c0_i32 = arith.constant 0 : i32
    %c0_i32_0 = arith.constant 0 : i32
    %c0_i32_1 = arith.constant 0 : i32
    return %c0_i32, %c0_i32_0 : i32, i32
  }
  func.func @transform_2(%arg0: i32) -> (i32, i32) {
    %c0_i32 = arith.constant 0 : i32
    %c0_i32_0 = arith.constant 0 : i32
    %c0_i32_1 = arith.constant 0 : i32
    return %c0_i32, %c0_i32_0 : i32, i32
  }
  func.func @transform_3(%arg0: i32) -> (i32, i32) {
    %c0_i32 = arith.constant 0 : i32
    %c0_i32_0 = arith.constant 0 : i32
    %c0_i32_1 = arith.constant 0 : i32
    return %c0_i32, %c0_i32_0 : i32, i32
  }
  func.func @transform_4(%arg0: i32) -> (i32, i32) {
    %c0_i32 = arith.constant 0 : i32
    %c0_i32_0 = arith.constant 0 : i32
    %c0_i32_1 = arith.constant 0 : i32
    return %c0_i32, %c0_i32_0 : i32, i32
  }
  func.func @transform_5(%arg0: i32) -> (i32, i32, i32) {
    %c0_i32 = arith.constant 0 : i32
    %c0_i32_0 = arith.constant 0 : i32
    %c0_i32_1 = arith.constant 0 : i32
    return %arg0, %c0_i32, %c0_i32_0 : i32, i32, i32
  }
}

</mosaic_0001>

<llo_original>
// kernel: tpu_custom_call.1
$region0: #{tpu_custom_call.1}
  #allocation0 [shape = 'u32[]', space=smem, size = 0x4, offset = 0x4, fixed_abs, tag = 'smem constant byte address 0x4 - core index']
  #allocation1 [shape = 'u32[144,128]{1,0:T(1,128)}', space=vmem, size = 0x12000, scoped, tag = 'internal scratch']
  %s0 = inlined_call_operand.hbm [shape: bf16[2,16,384], index: 0, kind: input, shape index: {}]
  %s1 = inlined_call_operand.hbm [shape: bf16[384,384], index: 1, kind: input, shape index: {}]
  %s2 = inlined_call_operand.vmem [shape: f32[1,128], index: 2, kind: input, shape index: {}]
  %s3 = inlined_call_operand.hbm [shape: bf16[128,128], index: 3, kind: input, shape index: {}]
  %s4 = inlined_call_operand.vmem [shape: f32[1,128], index: 4, kind: input, shape index: {}]
  %s5 = inlined_call_operand.hbm [shape: f32[2,1,128], index: 5, kind: output, shape index: {}]
  %s6 = sld [smem:[#allocation0]]
  $region65: #{tpu_custom_call.1} parent=0
    _
  %s8 = ssub.s32 1, %s6
  %s9 = scalar_select 0, %s8, %s6
  $region1: #{tpu_custom_call.1} parent=0
    #allocation2 [shape = 'u8[24576]{0}', space=vmem, size = 0x6000, scoped, tag = 'input window, operand 0']
    #allocation3 [shape = 's32[2]{0}', space=sflag, size = 0x8, scoped, tag = 'scoped memory for tpu_custom_call.1']
    #allocation4 [shape = 's32[2]{0}', space=sflag, size = 0x8, scoped, tag = 'scoped memory for tpu_custom_call.1']
    #allocation5 [shape = 'u8[294912]{0}', space=vmem, size = 0x48000, scoped, tag = 'input window, operand 1, single buffered']
    #allocation6 [shape = 's32[1]{0}', space=sflag, size = 0x4, scoped, tag = 'scoped memory for tpu_custom_call.1']
    #allocation7 [shape = 'u8[32768]{0}', space=vmem, size = 0x8000, scoped, tag = 'input window, operand 3, single buffered']
    #allocation8 [shape = 'u8[1024]{0}', space=vmem, size = 0x400, scoped, tag = 'output window, operand 0']
    %10 = vsyncpa [#allocation3], 0
    %s11 = scalar_lea.sflag [#allocation3], 1
    %12 = vsyncpa %s11, 0
    %13 = vsyncpa [#allocation6], 0
    %14 = vsyncpa [#allocation4], 0
    %s15 = scalar_lea.sflag [#allocation4], 1
    %16 = vsyncpa %s15, 0
    loop: start=0, step=1, limit=4
    $region2: #{tpu_custom_call.1} parent=1 // loop_pre_header
      _
    $region3: #{tpu_custom_call.1} parent=1 // loop_header
      %s18 = sphi 0, %s22
      %p19 = scmp.ge.s32.totalorder %s18, 4
      %s28 = sphi 0, %s30
      %s31 = sphi 0, %s28
      %s32 = sphi 0, %s31
      %s48 = sphi 0, %s32
      %s52 = sphi 0, %s52
      %s54 = sphi 0, %s52
      %s55 = sphi 0, %s54
      %s69 = sphi 0, %s55
      %s73 = sphi 0, %s73
      %s75 = sphi 0, %s73
      %s76 = sphi 0, %s75
      %s90 = sphi 0, %s76
      %s94 = sphi 0, %s94
      %s96 = sphi 0, %s94
      %s97 = sphi 0, %s96
      %s111 = sphi 0, %s97
      %s115 = sphi 0, %s115
      %s117 = sphi 0, %s115
      %s118 = sphi 0, %s117
      %s132 = sphi 0, %s118
      %s138 = sphi 0, %s140
      %s141 = sphi 0, %s138
      %s142 = sphi 0, %s141
      %s158 = sphi 0, %s142
    $region4: #{tpu_custom_call.1} parent=1 // loop_header_branch
      %21 = sbr.rel (%p19) target = $region8
    $region5: #{tpu_custom_call.1} parent=1 // loop_body
      %s23 = ssub.s32 %s18, 1
      %s24 = ssub.s32 %s18, 2
      %s25 = sadd.s32 %s18, 1
      %s26 = ssub.s32 %s18, %s25
      %p27 = scmp.eq.s32.totalorder %s26, 0
      %s29 = sadd.s32 %s28, 1
      %s30 = scalar_select %p27, %s28, %s29
      %p33 = pneg %p27
      %p34 = scmp.eq.s32.totalorder %s18, 1
      %p35 = por %p33, %p34
      %p36 = scmp.ne.s32.totalorder %s28, %s31
      %p37 = scmp.eq.s32.totalorder %s18, 0
      %p38 = por %p36, %p37
      %p39 = scmp.ne.s32.totalorder %s28, %s31
      %p40 = scmp.eq.s32.totalorder %s23, 1
      %p41 = por %p39, %p40
      %p42 = scmp.ne.s32.totalorder %s31, %s32
      %p43 = scmp.eq.s32.totalorder %s23, 0
      %p44 = por %p42, %p43
      %p45 = scmp.ne.s32.totalorder %s31, %s32
      %p46 = scmp.eq.s32.totalorder %s24, 1
      %p47 = por %p45, %p46
      %p49 = scmp.ne.s32.totalorder %s32, %s48
      %p50 = scmp.eq.s32.totalorder %s24, 0
      %p51 = por %p49, %p50
      %s53 = sadd.s32 %s52, 1
      %p56 = scmp.eq.s32.totalorder %s18, 1
      %p57 = scmp.ne.s32.totalorder %s52, %s54
      %p58 = scmp.eq.s32.totalorder %s18, 0
      %p59 = por %p57, %p58
      %p60 = scmp.ne.s32.totalorder %s52, %s54
      %p61 = scmp.eq.s32.totalorder %s23, 1
      %p62 = por %p60, %p61
      %p63 = scmp.ne.s32.totalorder %s54, %s55
      %p64 = scmp.eq.s32.totalorder %s23, 0
      %p65 = por %p63, %p64
      %p66 = scmp.ne.s32.totalorder %s54, %s55
      %p67 = scmp.eq.s32.totalorder %s24, 1
      %p68 = por %p66, %p67
      %p70 = scmp.ne.s32.totalorder %s55, %s69
      %p71 = scmp.eq.s32.totalorder %s24, 0
      %p72 = por %p70, %p71
      %s74 = sadd.s32 %s73, 1
      %p77 = scmp.eq.s32.totalorder %s18, 1
      %p78 = scmp.ne.s32.totalorder %s73, %s75
      %p79 = scmp.eq.s32.totalorder %s18, 0
      %p80 = por %p78, %p79
      %p81 = scmp.ne.s32.totalorder %s73, %s75
      %p82 = scmp.eq.s32.totalorder %s23, 1
      %p83 = por %p81, %p82
      %p84 = scmp.ne.s32.totalorder %s75, %s76
      %p85 = scmp.eq.s32.totalorder %s23, 0
      %p86 = por %p84, %p85
      %p87 = scmp.ne.s32.totalorder %s75, %s76
      %p88 = scmp.eq.s32.totalorder %s24, 1
      %p89 = por %p87, %p88
      %p91 = scmp.ne.s32.totalorder %s76, %s90
      %p92 = scmp.eq.s32.totalorder %s24, 0
      %p93 = por %p91, %p92
      %s95 = sadd.s32 %s94, 1
      %p98 = scmp.eq.s32.totalorder %s18, 1
      %p99 = scmp.ne.s32.totalorder %s94, %s96
      %p100 = scmp.eq.s32.totalorder %s18, 0
      %p101 = por %p99, %p100
      %p102 = scmp.ne.s32.totalorder %s94, %s96
      %p103 = scmp.eq.s32.totalorder %s23, 1
      %p104 = por %p102, %p103
      %p105 = scmp.ne.s32.totalorder %s96, %s97
      %p106 = scmp.eq.s32.totalorder %s23, 0
      %p107 = por %p105, %p106
      %p108 = scmp.ne.s32.totalorder %s96, %s97
      %p109 = scmp.eq.s32.totalorder %s24, 1
      %p110 = por %p108, %p109
      %p112 = scmp.ne.s32.totalorder %s97, %s111
      %p113 = scmp.eq.s32.totalorder %s24, 0
      %p114 = por %p112, %p113
      %s116 = sadd.s32 %s115, 1
      %p119 = scmp.eq.s32.totalorder %s18, 1
      %p120 = scmp.ne.s32.totalorder %s115, %s117
      %p121 = scmp.eq.s32.totalorder %s18, 0
      %p122 = por %p120, %p121
      %p123 = scmp.ne.s32.totalorder %s115, %s117
      %p124 = scmp.eq.s32.totalorder %s23, 1
      %p125 = por %p123, %p124
      %p126 = scmp.ne.s32.totalorder %s117, %s118
      %p127 = scmp.eq.s32.totalorder %s23, 0
      %p128 = por %p126, %p127
      %p129 = scmp.ne.s32.totalorder %s117, %s118
      %p130 = scmp.eq.s32.totalorder %s24, 1
      %p131 = por %p129, %p130
      %p133 = scmp.ne.s32.totalorder %s118, %s132
      %p134 = scmp.eq.s32.totalorder %s24, 0
      %p135 = por %p133, %p134
      %s136 = ssub.s32 %s18, %s25
      %p137 = scmp.eq.s32.totalorder %s136, 0
      %s139 = sadd.s32 %s138, 1
      %s140 = scalar_select %p137, %s138, %s139
      %p143 = pneg %p137
      %p144 = scmp.eq.s32.totalorder %s18, 1
      %p145 = por %p143, %p144
      %p146 = scmp.ne.s32.totalorder %s138, %s141
      %p147 = scmp.eq.s32.totalorder %s18, 0
      %p148 = por %p146, %p147
      %p149 = scmp.ne.s32.totalorder %s138, %s141
      %p150 = scmp.eq.s32.totalorder %s23, 1
      %p151 = por %p149, %p150
      %p152 = scmp.ne.s32.totalorder %s141, %s142
      %p153 = scmp.eq.s32.totalorder %s23, 0
      %p154 = por %p152, %p153
      %p155 = scmp.ne.s32.totalorder %s141, %s142
      %p156 = scmp.eq.s32.totalorder %s24, 1
      %p157 = por %p155, %p156
      %p159 = scmp.ne.s32.totalorder %s142, %s158
      %p160 = scmp.eq.s32.totalorder %s24, 0
      %p161 = por %p159, %p160
      %p162 = scmp.le.s32.totalorder 1, %s18
      %p163 = scmp.lt.s32.totalorder %s18, 3
      %p164 = pnand %p162, %p163
      %p165 = pneg %p164
      // Predicated region
      $region9: #{tpu_custom_call.1} parent=5 // pred_check
        _
      $region10: #{tpu_custom_call.1} parent=5 // pred_check_branch
        %167 = sbr.rel (%p164) target = $region12
      $region11: #{tpu_custom_call.1} parent=5 // pred_region
        %s168 = ssub.s32 %s18, 1
        // Predicated region
        $region13: #{tpu_custom_call.1} parent=11 // pred_check
          %p169 = pneg %p65
        $region14: #{tpu_custom_call.1} parent=11 // pred_check_branch
          %171 = sbr.rel (%p169) target = $region16
        $region15: #{tpu_custom_call.1} parent=11 // pred_region
          %s173 = ssub.s32 9216, 9216
          %174 = vsyncadd [#allocation6], %s173
          %s175 = sshll.u32 [#allocation5], 4
          %s176 = int_to_ptr.vmem [resolvable:$true] %s175
          %181 = dma.hbm_to_vmem [thread:$0]  %s1, 9216, %s176, [#allocation6], 192, 192, 12
        $region16: #{tpu_custom_call.1} parent=11 // pred_fallthru
          _
        // Predicated region
        $region17: #{tpu_custom_call.1} parent=11 // pred_check
          %p182 = pneg %p86
        $region18: #{tpu_custom_call.1} parent=11 // pred_check_branch
          %184 = sbr.rel (%p182) target = $region20
        $region19: #{tpu_custom_call.1} parent=11 // pred_region
          _
        $region20: #{tpu_custom_call.1} parent=11 // pred_fallthru
          _
        // Predicated region
        $region21: #{tpu_custom_call.1} parent=11 // pred_check
          %p185 = pneg %p107
        $region22: #{tpu_custom_call.1} parent=11 // pred_check_branch
          %187 = sbr.rel (%p185) target = $region24
        $region23: #{tpu_custom_call.1} parent=11 // pred_region
          %s189 = ssub.s32 1024, 1024
          %190 = vsyncadd [#allocation6], %s189
          %s191 = sshll.u32 [#allocation7], 4
          %s192 = int_to_ptr.vmem [resolvable:$true] %s191
          %197 = dma.hbm_to_vmem [thread:$0]  %s3, 1024, %s192, [#allocation6], 64, 64, 4
        $region24: #{tpu_custom_call.1} parent=11 // pred_fallthru
          _
        // Predicated region
        $region25: #{tpu_custom_call.1} parent=11 // pred_check
          %p198 = pneg %p128
        $region26: #{tpu_custom_call.1} parent=11 // pred_check_branch
          %200 = sbr.rel (%p198) target = $region28
        $region27: #{tpu_custom_call.1} parent=11 // pred_region
          _
        $region28: #{tpu_custom_call.1} parent=11 // pred_fallthru
          _
      $region12: #{tpu_custom_call.1} parent=5 // pred_fallthru
        _
      %p201 = scmp.lt.s32.totalorder %s18, 2
      // Predicated region
      $region29: #{tpu_custom_call.1} parent=5 // pred_check
        %p202 = pneg %p201
      $region30: #{tpu_custom_call.1} parent=5 // pred_check_branch
        %204 = sbr.rel (%p202) target = $region32
      $region31: #{tpu_custom_call.1} parent=5 // pred_region
        // Predicated region
        $region33: #{tpu_custom_call.1} parent=31 // pred_check
          %p205 = pneg %p38
        $region34: #{tpu_custom_call.1} parent=31 // pred_check_branch
          %207 = sbr.rel (%p205) target = $region36
        $region35: #{tpu_custom_call.1} parent=31 // pred_region
          %s208 = sand.u32 %s28, 1
          %s209 = scalar_lea.sflag [#allocation3], %s208
          %s210 = sand.u32 %s28, 1
          %s211 = smul.addr %s210, 24
          %s212 = scalar_lea.vmem [#allocation2], %s211
          %s214 = ssub.s32 384, 384
          %215 = vsyncadd %s209, %s214
          %s216 = smul.addr %s18, 6
          %s217 = smul.addr %s216, 64
          %s218 = scalar_lea.hbm %s0, %s217
          %s219 = sshll.u32 %s212, 4
          %s220 = int_to_ptr.vmem [resolvable:$true] %s219
          %225 = dma.hbm_to_vmem [thread:$0]  %s218, 384, %s220, %s209, 192, 192, 12
        $region36: #{tpu_custom_call.1} parent=31 // pred_fallthru
          _
      $region32: #{tpu_custom_call.1} parent=5 // pred_fallthru
        _
      %p226 = scmp.le.s32.totalorder 1, %s18
      %p227 = scmp.lt.s32.totalorder %s18, 3
      %p228 = pnand %p226, %p227
      %p229 = pneg %p228
      // Predicated region
      $region37: #{tpu_custom_call.1} parent=5 // pred_check
        _
      $region38: #{tpu_custom_call.1} parent=5 // pred_check_branch
        %231 = sbr.rel (%p228) target = $region40
      $region39: #{tpu_custom_call.1} parent=5 // pred_region
        %s232 = ssub.s32 %s18, 1
        %s233 = sand.u32 %s31, 1
        %s234 = scalar_lea.sflag [#allocation3], %s233
        %s235 = sand.u32 %s31, 1
        %s236 = smul.addr %s235, 24
        %s237 = scalar_lea.vmem [#allocation2], %s236
        // Predicated region
        $region41: #{tpu_custom_call.1} parent=39 // pred_check
          %p238 = pneg %p44
        $region42: #{tpu_custom_call.1} parent=39 // pred_check_branch
          %240 = sbr.rel (%p238) target = $region44
        $region43: #{tpu_custom_call.1} parent=39 // pred_region
          %241 = dma.done %s234, 384
        $region44: #{tpu_custom_call.1} parent=39 // pred_fallthru
          _
        // Predicated region
        $region45: #{tpu_custom_call.1} parent=39 // pred_check
          %p242 = pneg %p65
        $region46: #{tpu_custom_call.1} parent=39 // pred_check_branch
          %244 = sbr.rel (%p242) target = $region48
        $region47: #{tpu_custom_call.1} parent=39 // pred_region
          %245 = dma.done [#allocation6], 9216
        $region48: #{tpu_custom_call.1} parent=39 // pred_fallthru
          _
        // Predicated region
        $region49: #{tpu_custom_call.1} parent=39 // pred_check
          %p246 = pneg %p107
        $region50: #{tpu_custom_call.1} parent=39 // pred_check_branch
          %248 = sbr.rel (%p246) target = $region52
        $region51: #{tpu_custom_call.1} parent=39 // pred_region
          %249 = dma.done [#allocation6], 1024
        $region52: #{tpu_custom_call.1} parent=39 // pred_fallthru
          _
        %s250 = sand.u32 %s31, 1
        %s251 = scalar_lea.sflag [#allocation3], %s250
        %s252 = sand.u32 %s31, 1
        %s253 = smul.addr %s252, 24
        %s254 = scalar_lea.vmem [#allocation2], %s253
        %p255 = pneg %p44
        %p256 = pneg %p41
        %p257 = pneg %p65
        %p258 = pneg %p62
        %p259 = pneg %p86
        %p260 = pneg %p83
        %p261 = pneg %p107
        %p262 = pneg %p104
        %p263 = pneg %p128
        %p264 = pneg %p125
        %p265 = pneg %p154
        %p266 = pneg %p151
        %s267 = sand.u32 %s141, 1
        %s268 = scalar_lea.sflag [#allocation4], %s267
        %s269 = sand.u32 %s141, 1
        %s270 = scalar_lea.vmem [#allocation8], %s269
        %v272 = vld [vmem:[%s237] sm:$0xff]
        %v273 = vld [vmem:[%s237 + $0x8] sm:$0xf]
        %v274 = vld [vmem:[%s237 + $0xc] sm:$0xff]
        %v275 = vld [vmem:[%s237 + $0x14] sm:$0xf]
        %v276 = vld [vmem:[#allocation5] sm:$0xff]
        %v277 = vld [vmem:[#allocation5 + $0x8] sm:$0xf]
        %v278 = vld [vmem:[#allocation5 + $0xc] sm:$0xff]
        %v279 = vld [vmem:[#allocation5 + $0x14] sm:$0xf]
        %v280 = vld [vmem:[#allocation5 + $0x18] sm:$0xff]
        %v281 = vld [vmem:[#allocation5 + $0x20] sm:$0xf]
        %v282 = vld [vmem:[#allocation5 + $0x24] sm:$0xff]
        %v283 = vld [vmem:[#allocation5 + $0x2c] sm:$0xf]
        %v284 = vld [vmem:[#allocation5 + $0x30] sm:$0xff]
        %v285 = vld [vmem:[#allocation5 + $0x38] sm:$0xf]
        %v286 = vld [vmem:[#allocation5 + $0x3c] sm:$0xff]
        %v287 = vld [vmem:[#allocation5 + $0x44] sm:$0xf]
        %v288 = vld [vmem:[#allocation5 + $0x48] sm:$0xff]
        %v289 = vld [vmem:[#allocation5 + $0x50] sm:$0xf]
        %v290 = vld [vmem:[#allocation5 + $0x54] sm:$0xff]
        %v291 = vld [vmem:[#allocation5 + $0x5c] sm:$0xf]
        %v292 = vld [vmem:[#allocation5 + $0x60] sm:$0xff]
        %v293 = vld [vmem:[#allocation5 + $0x68] sm:$0xf]
        %v294 = vld [vmem:[#allocation5 + $0x6c] sm:$0xff]
        %v295 = vld [vmem:[#allocation5 + $0x74] sm:$0xf]
        %v296 = vld [vmem:[#allocation5 + $0x78] sm:$0xff]
        %v297 = vld [vmem:[#allocation5 + $0x80] sm:$0xf]
        %v298 = vld [vmem:[#allocation5 + $0x84] sm:$0xff]
        %v299 = vld [vmem:[#allocation5 + $0x8c] sm:$0xf]
        %v300 = vld [vmem:[#allocation5 + $0x90] sm:$0xff]
        %v301 = vld [vmem:[#allocation5 + $0x98] sm:$0xf]
        %v302 = vld [vmem:[#allocation5 + $0x9c] sm:$0xff]
        %v303 = vld [vmem:[#allocation5 + $0xa4] sm:$0xf]
        %v304 = vld [vmem:[#allocation5 + $0xa8] sm:$0xff]
        %v305 = vld [vmem:[#allocation5 + $0xb0] sm:$0xf]
        %v306 = vld [vmem:[#allocation5 + $0xb4] sm:$0xff]
        %v307 = vld [vmem:[#allocation5 + $0xbc] sm:$0xf]
        %v308 = vld [vmem:[#allocation5 + $0xc0] sm:$0xff]
        %v309 = vld [vmem:[#allocation5 + $0xc8] sm:$0xf]
        %v310 = vld [vmem:[#allocation5 + $0xcc] sm:$0xff]
        %v311 = vld [vmem:[#allocation5 + $0xd4] sm:$0xf]
        %v312 = vld [vmem:[#allocation5 + $0xd8] sm:$0xff]
        %v313 = vld [vmem:[#allocation5 + $0xe0] sm:$0xf]
        %v314 = vld [vmem:[#allocation5 + $0xe4] sm:$0xff]
        %v315 = vld [vmem:[#allocation5 + $0xec] sm:$0xf]
        %v316 = vld [vmem:[#allocation5 + $0xf0] sm:$0xff]
        %v317 = vld [vmem:[#allocation5 + $0xf8] sm:$0xf]
        %v318 = vld [vmem:[#allocation5 + $0xfc] sm:$0xff]
        %v319 = vld [vmem:[#allocation5 + $0x104] sm:$0xf]
        %v320 = vld [vmem:[#allocation5 + $0x108] sm:$0xff]
        %v321 = vld [vmem:[#allocation5 + $0x110] sm:$0xf]
        %v322 = vld [vmem:[#allocation5 + $0x114] sm:$0xff]
        %v323 = vld [vmem:[#allocation5 + $0x11c] sm:$0xf]
        %v324 = vld [vmem:[#allocation5 + $0x120] sm:$0xff]
        %v325 = vld [vmem:[#allocation5 + $0x128] sm:$0xf]
        %v326 = vld [vmem:[#allocation5 + $0x12c] sm:$0xff]
        %v327 = vld [vmem:[#allocation5 + $0x134] sm:$0xf]
        %v328 = vld [vmem:[#allocation5 + $0x138] sm:$0xff]
        %v329 = vld [vmem:[#allocation5 + $0x140] sm:$0xf]
        %v330 = vld [vmem:[#allocation5 + $0x144] sm:$0xff]
        %v331 = vld [vmem:[#allocation5 + $0x14c] sm:$0xf]
        %v332 = vld [vmem:[#allocation5 + $0x150] sm:$0xff]
        %v333 = vld [vmem:[#allocation5 + $0x158] sm:$0xf]
        %v334 = vld [vmem:[#allocation5 + $0x15c] sm:$0xff]
        %v335 = vld [vmem:[#allocation5 + $0x164] sm:$0xf]
        %v336 = vld [vmem:[#allocation5 + $0x168] sm:$0xff]
        %v337 = vld [vmem:[#allocation5 + $0x170] sm:$0xf]
        %v338 = vld [vmem:[#allocation5 + $0x174] sm:$0xff]
        %v339 = vld [vmem:[#allocation5 + $0x17c] sm:$0xf]
        %v340 = vld [vmem:[#allocation5 + $0x180] sm:$0xff]
        %v341 = vld [vmem:[#allocation5 + $0x188] sm:$0xf]
        %v342 = vld [vmem:[#allocation5 + $0x18c] sm:$0xff]
        %v343 = vld [vmem:[#allocation5 + $0x194] sm:$0xf]
        %v344 = vld [vmem:[#allocation5 + $0x198] sm:$0xff]
        %v345 = vld [vmem:[#allocation5 + $0x1a0] sm:$0xf]
        %v346 = vld [vmem:[#allocation5 + $0x1a4] sm:$0xff]
        %v347 = vld [vmem:[#allocation5 + $0x1ac] sm:$0xf]
        %v348 = vld [vmem:[#allocation5 + $0x1b0] sm:$0xff]
        %v349 = vld [vmem:[#allocation5 + $0x1b8] sm:$0xf]
        %v350 = vld [vmem:[#allocation5 + $0x1bc] sm:$0xff]
        %v351 = vld [vmem:[#allocation5 + $0x1c4] sm:$0xf]
        %v352 = vld [vmem:[#allocation5 + $0x1c8] sm:$0xff]
        %v353 = vld [vmem:[#allocation5 + $0x1d0] sm:$0xf]
        %v354 = vld [vmem:[#allocation5 + $0x1d4] sm:$0xff]
        %v355 = vld [vmem:[#allocation5 + $0x1dc] sm:$0xf]
        %v356 = vld [vmem:[#allocation5 + $0x1e0] sm:$0xff]
        %v357 = vld [vmem:[#allocation5 + $0x1e8] sm:$0xf]
        %v358 = vld [vmem:[#allocation5 + $0x1ec] sm:$0xff]
        %v359 = vld [vmem:[#allocation5 + $0x1f4] sm:$0xf]
        %v360 = vld [vmem:[#allocation5 + $0x1f8] sm:$0xff]
        %v361 = vld [vmem:[#allocation5 + $0x200] sm:$0xf]
        %v362 = vld [vmem:[#allocation5 + $0x204] sm:$0xff]
        %v363 = vld [vmem:[#allocation5 + $0x20c] sm:$0xf]
        %v364 = vld [vmem:[#allocation5 + $0x210] sm:$0xff]
        %v365 = vld [vmem:[#allocation5 + $0x218] sm:$0xf]
        %v366 = vld [vmem:[#allocation5 + $0x21c] sm:$0xff]
        %v367 = vld [vmem:[#allocation5 + $0x224] sm:$0xf]
        %v368 = vld [vmem:[#allocation5 + $0x228] sm:$0xff]
        %v369 = vld [vmem:[#allocation5 + $0x230] sm:$0xf]
        %v370 = vld [vmem:[#allocation5 + $0x234] sm:$0xff]
        %v371 = vld [vmem:[#allocation5 + $0x23c] sm:$0xf]
        %v376 = vunpack.c.l.b16 %v272
        %v377 = vunpack.c.h.b16 %v272
        %v378 = vunpack.c.l.b16 %v273
        %v379 = vunpack.c.l.b16 %v274
        %v380 = vunpack.c.h.b16 %v274
        %v381 = vunpack.c.l.b16 %v275
        %v382 = vpack.c.b16 %v379, %v376
        %v383 = vpack.c.b16 %v380, %v377
        %v384 = vpack.c.b16 %v381, %v378
        %v484 = vunpack.c.l.b16 %v276
        %v485 = vunpack.c.h.b16 %v276
        %v486 = vunpack.c.l.b16 %v277
        %v487 = vunpack.c.l.b16 %v278
        %v488 = vunpack.c.h.b16 %v278
        %v489 = vunpack.c.l.b16 %v279
        %v490 = vunpack.c.l.b16 %v280
        %v491 = vunpack.c.h.b16 %v280
        %v492 = vunpack.c.l.b16 %v281
        %v493 = vunpack.c.l.b16 %v282
        %v494 = vunpack.c.h.b16 %v282
        %v495 = vunpack.c.l.b16 %v283
        %v496 = vunpack.c.l.b16 %v284
        %v497 = vunpack.c.h.b16 %v284
        %v498 = vunpack.c.l.b16 %v285
        %v499 = vunpack.c.l.b16 %v286
        %v500 = vunpack.c.h.b16 %v286
        %v501 = vunpack.c.l.b16 %v287
        %v502 = vunpack.c.l.b16 %v288
        %v503 = vunpack.c.h.b16 %v288
        %v504 = vunpack.c.l.b16 %v289
        %v505 = vunpack.c.l.b16 %v290
        %v506 = vunpack.c.h.b16 %v290
        %v507 = vunpack.c.l.b16 %v291
        %v508 = vunpack.c.l.b16 %v292
        %v509 = vunpack.c.h.b16 %v292
        %v510 = vunpack.c.l.b16 %v293
        %v511 = vunpack.c.l.b16 %v294
        %v512 = vunpack.c.h.b16 %v294
        %v513 = vunpack.c.l.b16 %v295
        %v514 = vunpack.c.l.b16 %v296
        %v515 = vunpack.c.h.b16 %v296
        %v516 = vunpack.c.l.b16 %v297
        %v517 = vunpack.c.l.b16 %v298
        %v518 = vunpack.c.h.b16 %v298
        %v519 = vunpack.c.l.b16 %v299
        %v520 = vunpack.c.l.b16 %v300
        %v521 = vunpack.c.h.b16 %v300
        %v522 = vunpack.c.l.b16 %v301
        %v523 = vunpack.c.l.b16 %v302
        %v524 = vunpack.c.h.b16 %v302
        %v525 = vunpack.c.l.b16 %v303
        %v526 = vunpack.c.l.b16 %v304
        %v527 = vunpack.c.h.b16 %v304
        %v528 = vunpack.c.l.b16 %v305
        %v529 = vunpack.c.l.b16 %v306
        %v530 = vunpack.c.h.b16 %v306
        %v531 = vunpack.c.l.b16 %v307
        %v532 = vunpack.c.l.b16 %v308
        %v533 = vunpack.c.h.b16 %v308
        %v534 = vunpack.c.l.b16 %v309
        %v535 = vunpack.c.l.b16 %v310
        %v536 = vunpack.c.h.b16 %v310
        %v537 = vunpack.c.l.b16 %v311
        %v538 = vunpack.c.l.b16 %v312
        %v539 = vunpack.c.h.b16 %v312
        %v540 = vunpack.c.l.b16 %v313
        %v541 = vunpack.c.l.b16 %v314
        %v542 = vunpack.c.h.b16 %v314
        %v543 = vunpack.c.l.b16 %v315
        %v544 = vunpack.c.l.b16 %v316
        %v545 = vunpack.c.h.b16 %v316
        %v546 = vunpack.c.l.b16 %v317
        %v547 = vunpack.c.l.b16 %v318
        %v548 = vunpack.c.h.b16 %v318
        %v549 = vunpack.c.l.b16 %v319
        %v550 = vunpack.c.l.b16 %v320
        %v551 = vunpack.c.h.b16 %v320
        %v552 = vunpack.c.l.b16 %v321
        %v553 = vunpack.c.l.b16 %v322
        %v554 = vunpack.c.h.b16 %v322
        %v555 = vunpack.c.l.b16 %v323
        %v556 = vunpack.c.l.b16 %v324
        %v557 = vunpack.c.h.b16 %v324
        %v558 = vunpack.c.l.b16 %v325
        %v559 = vunpack.c.l.b16 %v326
        %v560 = vunpack.c.h.b16 %v326
        %v561 = vunpack.c.l.b16 %v327
        %v562 = vunpack.c.l.b16 %v328
        %v563 = vunpack.c.h.b16 %v328
        %v564 = vunpack.c.l.b16 %v329
        %v565 = vunpack.c.l.b16 %v330
        %v566 = vunpack.c.h.b16 %v330
        %v567 = vunpack.c.l.b16 %v331
        %v568 = vunpack.c.l.b16 %v332
        %v569 = vunpack.c.h.b16 %v332
        %v570 = vunpack.c.l.b16 %v333
        %v571 = vunpack.c.l.b16 %v334
        %v572 = vunpack.c.h.b16 %v334
        %v573 = vunpack.c.l.b16 %v335
        %v574 = vunpack.c.l.b16 %v336
        %v575 = vunpack.c.h.b16 %v336
        %v576 = vunpack.c.l.b16 %v337
        %v577 = vunpack.c.l.b16 %v338
        %v578 = vunpack.c.h.b16 %v338
        %v579 = vunpack.c.l.b16 %v339
        %v580 = vunpack.c.l.b16 %v340
        %v581 = vunpack.c.h.b16 %v340
        %v582 = vunpack.c.l.b16 %v341
        %v583 = vunpack.c.l.b16 %v342
        %v584 = vunpack.c.h.b16 %v342
        %v585 = vunpack.c.l.b16 %v343
        %v586 = vunpack.c.l.b16 %v344
        %v587 = vunpack.c.h.b16 %v344
        %v588 = vunpack.c.l.b16 %v345
        %v589 = vunpack.c.l.b16 %v346
        %v590 = vunpack.c.h.b16 %v346
        %v591 = vunpack.c.l.b16 %v347
        %v592 = vunpack.c.l.b16 %v348
        %v593 = vunpack.c.h.b16 %v348
        %v594 = vunpack.c.l.b16 %v349
        %v595 = vunpack.c.l.b16 %v350
        %v596 = vunpack.c.h.b16 %v350
        %v597 = vunpack.c.l.b16 %v351
        %v598 = vunpack.c.l.b16 %v352
        %v599 = vunpack.c.h.b16 %v352
        %v600 = vunpack.c.l.b16 %v353
        %v601 = vunpack.c.l.b16 %v354
        %v602 = vunpack.c.h.b16 %v354
        %v603 = vunpack.c.l.b16 %v355
        %v604 = vunpack.c.l.b16 %v356
        %v605 = vunpack.c.h.b16 %v356
        %v606 = vunpack.c.l.b16 %v357
        %v607 = vunpack.c.l.b16 %v358
        %v608 = vunpack.c.h.b16 %v358
        %v609 = vunpack.c.l.b16 %v359
        %v610 = vunpack.c.l.b16 %v360
        %v611 = vunpack.c.h.b16 %v360
        %v612 = vunpack.c.l.b16 %v361
        %v613 = vunpack.c.l.b16 %v362
        %v614 = vunpack.c.h.b16 %v362
        %v615 = vunpack.c.l.b16 %v363
        %v616 = vunpack.c.l.b16 %v364
        %v617 = vunpack.c.h.b16 %v364
        %v618 = vunpack.c.l.b16 %v365
        %v619 = vunpack.c.l.b16 %v366
        %v620 = vunpack.c.h.b16 %v366
        %v621 = vunpack.c.l.b16 %v367
        %v622 = vunpack.c.l.b16 %v368
        %v623 = vunpack.c.h.b16 %v368
        %v624 = vunpack.c.l.b16 %v369
        %v625 = vunpack.c.l.b16 %v370
        %v626 = vunpack.c.h.b16 %v370
        %v627 = vunpack.c.l.b16 %v371
        %v628 = vpack.c.b16 %v487, %v484
        %v629 = vpack.c.b16 %v488, %v485
        %v630 = vpack.c.b16 %v489, %v486
        %v631 = vpack.c.b16 %v493, %v490
        %v632 = vpack.c.b16 %v494, %v491
        %v633 = vpack.c.b16 %v495, %v492
        %v634 = vpack.c.b16 %v499, %v496
        %v635 = vpack.c.b16 %v500, %v497
        %v636 = vpack.c.b16 %v501, %v498
        %v637 = vpack.c.b16 %v505, %v502
        %v638 = vpack.c.b16 %v506, %v503
        %v639 = vpack.c.b16 %v507, %v504
        %v640 = vpack.c.b16 %v511, %v508
        %v641 = vpack.c.b16 %v512, %v509
        %v642 = vpack.c.b16 %v513, %v510
        %v643 = vpack.c.b16 %v517, %v514
        %v644 = vpack.c.b16 %v518, %v515
        %v645 = vpack.c.b16 %v519, %v516
        %v646 = vpack.c.b16 %v523, %v520
        %v647 = vpack.c.b16 %v524, %v521
        %v648 = vpack.c.b16 %v525, %v522
        %v649 = vpack.c.b16 %v529, %v526
        %v650 = vpack.c.b16 %v530, %v527
        %v651 = vpack.c.b16 %v531, %v528
        %v652 = vpack.c.b16 %v535, %v532
        %v653 = vpack.c.b16 %v536, %v533
        %v654 = vpack.c.b16 %v537, %v534
        %v655 = vpack.c.b16 %v541, %v538
        %v656 = vpack.c.b16 %v542, %v539
        %v657 = vpack.c.b16 %v543, %v540
        %v658 = vpack.c.b16 %v547, %v544
        %v659 = vpack.c.b16 %v548, %v545
        %v660 = vpack.c.b16 %v549, %v546
        %v661 = vpack.c.b16 %v553, %v550
        %v662 = vpack.c.b16 %v554, %v551
        %v663 = vpack.c.b16 %v555, %v552
        %v664 = vpack.c.b16 %v559, %v556
        %v665 = vpack.c.b16 %v560, %v557
        %v666 = vpack.c.b16 %v561, %v558
        %v667 = vpack.c.b16 %v565, %v562
        %v668 = vpack.c.b16 %v566, %v563
        %v669 = vpack.c.b16 %v567, %v564
        %v670 = vpack.c.b16 %v571, %v568
        %v671 = vpack.c.b16 %v572, %v569
        %v672 = vpack.c.b16 %v573, %v570
        %v673 = vpack.c.b16 %v577, %v574
        %v674 = vpack.c.b16 %v578, %v575
        %v675 = vpack.c.b16 %v579, %v576
        %v676 = vpack.c.b16 %v583, %v580
        %v677 = vpack.c.b16 %v584, %v581
        %v678 = vpack.c.b16 %v585, %v582
        %v679 = vpack.c.b16 %v589, %v586
        %v680 = vpack.c.b16 %v590, %v587
        %v681 = vpack.c.b16 %v591, %v588
        %v682 = vpack.c.b16 %v595, %v592
        %v683 = vpack.c.b16 %v596, %v593
        %v684 = vpack.c.b16 %v597, %v594
        %v685 = vpack.c.b16 %v601, %v598
        %v686 = vpack.c.b16 %v602, %v599
        %v687 = vpack.c.b16 %v603, %v600
        %v688 = vpack.c.b16 %v607, %v604
        %v689 = vpack.c.b16 %v608, %v605
        %v690 = vpack.c.b16 %v609, %v606
        %v691 = vpack.c.b16 %v613, %v610
        %v692 = vpack.c.b16 %v614, %v611
        %v693 = vpack.c.b16 %v615, %v612
        %v694 = vpack.c.b16 %v619, %v616
        %v695 = vpack.c.b16 %v620, %v617
        %v696 = vpack.c.b16 %v621, %v618
        %v697 = vpack.c.b16 %v625, %v622
        %v698 = vpack.c.b16 %v626, %v623
        %v699 = vpack.c.b16 %v627, %v624
        %772 = vmatprep.subr.bf16.mxu0 %v650
        %773 = vmatpush1.bf16.msra.mxu0 %v649
        %774 = vmatprep.subr.bf16.mxu0 %v647
        %775 = vmatpush1.bf16.msra.mxu0 %v646
        %776 = vmatprep.subr.bf16.mxu0 %v644
        %777 = vmatpush1.bf16.msra.mxu0 %v643
        %778 = vmatprep.subr.bf16.mxu0 %v641
        %779 = vmatpush1.bf16.msra.mxu0 %v640
        %780 = vmatprep.subr.bf16.mxu0 %v638
        %781 = vmatpush1.bf16.msra.mxu0 %v637
        %782 = vmatprep.subr.bf16.mxu0 %v635
        %783 = vmatpush1.bf16.msra.mxu0 %v634
        %784 = vmatprep.subr.bf16.mxu0 %v632
        %785 = vmatpush1.bf16.msra.mxu0 %v631
        %786 = vmatprep.subr.bf16.mxu0 %v629
        %787 = vmatpush1.bf16.msra.mxu0 %v628
        %788 = vmatprep.subr.bf16.mxu0 %v674
        %789 = vmatpush2.bf16.msra.mxu0 %v673
        %790 = vmatprep.subr.bf16.mxu0 %v671
        %791 = vmatpush2.bf16.msra.mxu0 %v670
        %792 = vmatprep.subr.bf16.mxu0 %v668
        %793 = vmatpush2.bf16.msra.mxu0 %v667
        %794 = vmatprep.subr.bf16.mxu0 %v665
        %795 = vmatpush2.bf16.msra.mxu0 %v664
        %796 = vmatprep.subr.bf16.mxu0 %v662
        %797 = vmatpush2.bf16.msra.mxu0 %v661
        %798 = vmatprep.subr.bf16.mxu0 %v659
        %799 = vmatpush2.bf16.msra.mxu0 %v658
        %800 = vmatprep.subr.bf16.mxu0 %v656
        %801 = vmatpush2.bf16.msra.mxu0 %v655
        %802 = vmatprep.subr.bf16.mxu0 %v653
        %803 = vmatpush2.bf16.msra.mxu0 %v652
        %804 = vmatprep.mubr.bf16.mxu0 %v383
        %805 = vmatmul.mubr.bf16.gmra.mxu0 %v382
        %v806 = vpop.f32.mrf.mxu0
        %v807 = vadd.f32 0.0, %v806
        %v808 = vpop.f32.mrf.mxu0
        %v809 = vadd.f32 0.0, %v808
        %v810 = vpop.f32.mrf.mxu0
        %v811 = vadd.f32 0.0, %v810
        %v812 = vpop.f32.mrf.mxu0
        %v813 = vadd.f32 0.0, %v812
        %814 = vdwg.mxu0
        %815 = vmatprep.subr.bf16.mxu0 %v698
        %816 = vmatpush1.bf16.msra.mxu0 %v697
        %817 = vmatprep.subr.bf16.mxu0 %v695
        %818 = vmatpush1.bf16.msra.mxu0 %v694
        %819 = vmatprep.subr.bf16.mxu0 %v692
        %820 = vmatpush1.bf16.msra.mxu0 %v691
        %821 = vmatprep.subr.bf16.mxu0 %v689
        %822 = vmatpush1.bf16.msra.mxu0 %v688
        %823 = vmatprep.subr.bf16.mxu0 %v686
        %824 = vmatpush1.bf16.msra.mxu0 %v685
        %825 = vmatprep.subr.bf16.mxu0 %v683
        %826 = vmatpush1.bf16.msra.mxu0 %v682
        %827 = vmatprep.subr.bf16.mxu0 %v680
        %828 = vmatpush1.bf16.msra.mxu0 %v679
        %829 = vmatprep.subr.bf16.mxu0 %v677
        %830 = vmatpush1.bf16.msra.mxu0 %v676
        %831 = vmatprep.subr.bf16.mxu0 0
        %832 = vmatpush2.bf16.msra.mxu0 0
        %833 = vmatprep.subr.bf16.mxu0 0
        %834 = vmatpush2.bf16.msra.mxu0 0
        %835 = vmatprep.subr.bf16.mxu0 0
        %836 = vmatpush2.bf16.msra.mxu0 0
        %837 = vmatprep.subr.bf16.mxu0 0
        %838 = vmatpush2.bf16.msra.mxu0 0
        %839 = vmatprep.subr.bf16.mxu0 0
        %840 = vmatpush2.bf16.msra.mxu0 0
        %841 = vmatprep.subr.bf16.mxu0 0
        %842 = vmatpush2.bf16.msra.mxu0 0
        %843 = vmatprep.subr.bf16.mxu0 0
        %844 = vmatpush2.bf16.msra.mxu0 0
        %845 = vmatprep.subr.bf16.mxu0 0
        %846 = vmatpush2.bf16.msra.mxu0 0
        %847 = vmatprep.mubr.bf16.mxu0 0
        %848 = vmatmul.mubr.bf16.gmra.mxu0 %v384
        %v849 = vpop.f32.mrf.mxu0
        %v850 = vadd.f32 %v807, %v849
        %v851 = vpop.f32.mrf.mxu0
        %v852 = vadd.f32 %v809, %v851
        %v853 = vpop.f32.mrf.mxu0
        %v854 = vadd.f32 %v811, %v853
        %v855 = vpop.f32.mrf.mxu0
        %v856 = vadd.f32 %v813, %v855
        %857 = vdwg.mxu0
        %858 = vmatprep.subr.bf16.mxu0 0
        %859 = vmatpush1.bf16.msra.mxu0 %v651
        %860 = vmatprep.subr.bf16.mxu0 0
        %861 = vmatpush1.bf16.msra.mxu0 %v648
        %862 = vmatprep.subr.bf16.mxu0 0
        %863 = vmatpush1.bf16.msra.mxu0 %v645
        %864 = vmatprep.subr.bf16.mxu0 0
        %865 = vmatpush1.bf16.msra.mxu0 %v642
        %866 = vmatprep.subr.bf16.mxu0 0
        %867 = vmatpush1.bf16.msra.mxu0 %v639
        %868 = vmatprep.subr.bf16.mxu0 0
        %869 = vmatpush1.bf16.msra.mxu0 %v636
        %870 = vmatprep.subr.bf16.mxu0 0
        %871 = vmatpush1.bf16.msra.mxu0 %v633
        %872 = vmatprep.subr.bf16.mxu0 0
        %873 = vmatpush1.bf16.msra.mxu0 %v630
        %874 = vmatprep.subr.bf16.mxu0 0
        %875 = vmatpush2.bf16.msra.mxu0 %v675
        %876 = vmatprep.subr.bf16.mxu0 0
        %877 = vmatpush2.bf16.msra.mxu0 %v672
        %878 = vmatprep.subr.bf16.mxu0 0
        %879 = vmatpush2.bf16.msra.mxu0 %v669
        %880 = vmatprep.subr.bf16.mxu0 0
        %881 = vmatpush2.bf16.msra.mxu0 %v666
        %882 = vmatprep.subr.bf16.mxu0 0
        %883 = vmatpush2.bf16.msra.mxu0 %v663
        %884 = vmatprep.subr.bf16.mxu0 0
        %885 = vmatpush2.bf16.msra.mxu0 %v660
        %886 = vmatprep.subr.bf16.mxu0 0
        %887 = vmatpush2.bf16.msra.mxu0 %v657
        %888 = vmatprep.subr.bf16.mxu0 0
        %889 = vmatpush2.bf16.msra.mxu0 %v654
        %890 = vmatprep.mubr.bf16.mxu0 %v383
        %891 = vmatmul.mubr.bf16.gmra.mxu0 %v382
        %v892 = vpop.f32.mrf.mxu0
        %v893 = vadd.f32 0.0, %v892
        %v894 = vpop.f32.mrf.mxu0
        %v895 = vpop.f32.mrf.mxu0
        %v896 = vadd.f32 0.0, %v895
        %v897 = vpop.f32.mrf.mxu0
        %898 = vdwg.mxu0
        %899 = vmatprep.subr.bf16.mxu0 0
        %900 = vmatpush1.bf16.msra.mxu0 %v699
        %901 = vmatprep.subr.bf16.mxu0 0
        %902 = vmatpush1.bf16.msra.mxu0 %v696
        %903 = vmatprep.subr.bf16.mxu0 0
        %904 = vmatpush1.bf16.msra.mxu0 %v693
        %905 = vmatprep.subr.bf16.mxu0 0
        %906 = vmatpush1.bf16.msra.mxu0 %v690
        %907 = vmatprep.subr.bf16.mxu0 0
        %908 = vmatpush1.bf16.msra.mxu0 %v687
        %909 = vmatprep.subr.bf16.mxu0 0
        %910 = vmatpush1.bf16.msra.mxu0 %v684
        %911 = vmatprep.subr.bf16.mxu0 0
        %912 = vmatpush1.bf16.msra.mxu0 %v681
        %913 = vmatprep.subr.bf16.mxu0 0
        %914 = vmatpush1.bf16.msra.mxu0 %v678
        %915 = vmatprep.subr.bf16.mxu0 0
        %916 = vmatpush2.bf16.msra.mxu0 0
        %917 = vmatprep.subr.bf16.mxu0 0
        %918 = vmatpush2.bf16.msra.mxu0 0
        %919 = vmatprep.subr.bf16.mxu0 0
        %920 = vmatpush2.bf16.msra.mxu0 0
        %921 = vmatprep.subr.bf16.mxu0 0
        %922 = vmatpush2.bf16.msra.mxu0 0
        %923 = vmatprep.subr.bf16.mxu0 0
        %924 = vmatpush2.bf16.msra.mxu0 0
        %925 = vmatprep.subr.bf16.mxu0 0
        %926 = vmatpush2.bf16.msra.mxu0 0
        %927 = vmatprep.subr.bf16.mxu0 0
        %928 = vmatpush2.bf16.msra.mxu0 0
        %929 = vmatprep.subr.bf16.mxu0 0
        %930 = vmatpush2.bf16.msra.mxu0 0
        %931 = vmatprep.mubr.bf16.mxu0 0
        %932 = vmatmul.mubr.bf16.gmra.mxu0 %v384
        %v933 = vpop.f32.mrf.mxu0
        %v934 = vadd.f32 %v893, %v933
        %v935 = vpop.f32.mrf.mxu0
        %v936 = vpop.f32.mrf.mxu0
        %v937 = vadd.f32 %v896, %v936
        %v938 = vpop.f32.mrf.mxu0
        %939 = vdwg.mxu0
        %v940 = vrot.slane %v852, 1
        %v941 = vrot.slane %v856, 1
        %v942 = vlaneseq
        %v943 = vshrl.u32 %v942, 7
        %vm944 = vcmp.lt.s32.totalorder %v943, 7
        %v945 = vsel %vm944, %v940, %v941
        %v946 = vsel %vm944, %v941, %v940
        %v947 = vadd.f32 %v850, %v945
        %v948 = vadd.f32 %v854, %v946
        %v949 = vrot.slane %v934, 2
        %v950 = vrot.slane %v937, 2
        %vm951 = vcmp.lt.s32.totalorder %v943, 6
        %v952 = vsel %vm951, %v949, %v950
        %v953 = vsel %vm951, %v950, %v949
        %v954 = vadd.f32 %v947, %v952
        %v955 = vadd.f32 %v948, %v953
        %v956 = vld [vmem:[%s2] sm:$0x1]
        %v958 = vlaneseq
        %v959 = vshrl.u32 %v958, 7
        %v960 = vsub.s32 0, %v959
        %v961 = vrot.slane %v956, %v960
        %v963 = vadd.f32 %v954, %v961
        %v964 = vadd.f32 %v955, %v961
        %v965 = vmax.f32 %v963, 0.0
        %v966 = vmax.f32 %v964, 0.0
        %v967 = vadd.s32 %v943, 8
        %vm968 = vcmp.lt.s32.totalorder %v943, 8
        %vm969 = vcmp.lt.s32.totalorder %v967, 8
        %v970 = vsel %vm968, 1, 0
        %v971 = vsel %vm969, 1, 0
        %vm972 = vcmp.eq.s32.totalorder %v970, 1
        %vm973 = vcmp.eq.s32.totalorder %v971, 1
        %v974 = vsel %vm972, %v965, -inf
        %v975 = vsel %vm973, %v966, -inf
        %v976 = vmax.f32 %v974, %v975
        %v977 = vrot.slane %v976, 4
        %v978 = vmax.f32 %v976, %v977
        %v979 = vrot.slane %v978, 2
        %v980 = vmax.f32 %v978, %v979
        %v981 = vrot.slane %v980, 1
        %v982 = vmax.f32 %v980, %v981
        %v983 = vpack.c.bf16 %v982, %v982
        %v984 = vld [vmem:[#allocation7] sm:$0xf]
        %v985 = vld [vmem:[#allocation7 + $0x4] sm:$0xf]
        %v986 = vld [vmem:[#allocation7 + $0x8] sm:$0xf]
        %v987 = vld [vmem:[#allocation7 + $0xc] sm:$0xf]
        %v988 = vld [vmem:[#allocation7 + $0x10] sm:$0xf]
        %v989 = vld [vmem:[#allocation7 + $0x14] sm:$0xf]
        %v990 = vld [vmem:[#allocation7 + $0x18] sm:$0xf]
        %v991 = vld [vmem:[#allocation7 + $0x1c] sm:$0xf]
        %v992 = vld [vmem:[#allocation7 + $0x20] sm:$0xf]
        %v993 = vld [vmem:[#allocation7 + $0x24] sm:$0xf]
        %v994 = vld [vmem:[#allocation7 + $0x28] sm:$0xf]
        %v995 = vld [vmem:[#allocation7 + $0x2c] sm:$0xf]
        %v996 = vld [vmem:[#allocation7 + $0x30] sm:$0xf]
        %v997 = vld [vmem:[#allocation7 + $0x34] sm:$0xf]
        %v998 = vld [vmem:[#allocation7 + $0x38] sm:$0xf]
        %v999 = vld [vmem:[#allocation7 + $0x3c] sm:$0xf]
        %v1000 = vld [vmem:[%s4] sm:$0x1]
        %v1017 = vunpack.c.l.b16 %v984
        %v1018 = vunpack.c.l.b16 %v985
        %v1019 = vunpack.c.l.b16 %v986
        %v1020 = vunpack.c.l.b16 %v987
        %v1021 = vunpack.c.l.b16 %v988
        %v1022 = vunpack.c.l.b16 %v989
        %v1023 = vunpack.c.l.b16 %v990
        %v1024 = vunpack.c.l.b16 %v991
        %v1025 = vunpack.c.l.b16 %v992
        %v1026 = vunpack.c.l.b16 %v993
        %v1027 = vunpack.c.l.b16 %v994
        %v1028 = vunpack.c.l.b16 %v995
        %v1029 = vunpack.c.l.b16 %v996
        %v1030 = vunpack.c.l.b16 %v997
        %v1031 = vunpack.c.l.b16 %v998
        %v1032 = vunpack.c.l.b16 %v999
        %v1033 = vpack.c.b16 %v1018, %v1017
        %v1034 = vpack.c.b16 %v1020, %v1019
        %v1035 = vpack.c.b16 %v1022, %v1021
        %v1036 = vpack.c.b16 %v1024, %v1023
        %v1037 = vpack.c.b16 %v1026, %v1025
        %v1038 = vpack.c.b16 %v1028, %v1027
        %v1039 = vpack.c.b16 %v1030, %v1029
        %v1040 = vpack.c.b16 %v1032, %v1031
        %1049 = vmatprep.subr.bf16.mxu0 0
        %1050 = vmatpush1.bf16.msra.mxu0 %v1040
        %1051 = vmatprep.subr.bf16.mxu0 0
        %1052 = vmatpush1.bf16.msra.mxu0 %v1039
        %1053 = vmatprep.subr.bf16.mxu0 0
        %1054 = vmatpush1.bf16.msra.mxu0 %v1038
        %1055 = vmatprep.subr.bf16.mxu0 0
        %1056 = vmatpush1.bf16.msra.mxu0 %v1037
        %1057 = vmatprep.subr.bf16.mxu0 0
        %1058 = vmatpush1.bf16.msra.mxu0 %v1036
        %1059 = vmatprep.subr.bf16.mxu0 0
        %1060 = vmatpush1.bf16.msra.mxu0 %v1035
        %1061 = vmatprep.subr.bf16.mxu0 0
        %1062 = vmatpush1.bf16.msra.mxu0 %v1034
        %1063 = vmatprep.subr.bf16.mxu0 0
        %1064 = vmatpush1.bf16.msra.mxu0 %v1033
        %1065 = vmatprep.subr.bf16.mxu0 0
        %1066 = vmatpush2.bf16.msra.mxu0 0
        %1067 = vmatprep.subr.bf16.mxu0 0
        %1068 = vmatpush2.bf16.msra.mxu0 0
        %1069 = vmatprep.subr.bf16.mxu0 0
        %1070 = vmatpush2.bf16.msra.mxu0 0
        %1071 = vmatprep.subr.bf16.mxu0 0
        %1072 = vmatpush2.bf16.msra.mxu0 0
        %1073 = vmatprep.subr.bf16.mxu0 0
        %1074 = vmatpush2.bf16.msra.mxu0 0
        %1075 = vmatprep.subr.bf16.mxu0 0
        %1076 = vmatpush2.bf16.msra.mxu0 0
        %1077 = vmatprep.subr.bf16.mxu0 0
        %1078 = vmatpush2.bf16.msra.mxu0 0
        %1079 = vmatprep.subr.bf16.mxu0 0
        %1080 = vmatpush2.bf16.msra.mxu0 0
        %1081 = vmatprep.mubr.bf16.mxu0 0
        %1082 = vmatmul.mubr.bf16.gmra.mxu0 %v983
        %v1083 = vpop.f32.mrf.mxu0
        %v1084 = vadd.f32 %v1000, %v1083
        %v1085 = vpop.f32.mrf.mxu0
        %v1086 = vpop.f32.mrf.mxu0
        %v1087 = vpop.f32.mrf.mxu0
        %1088 = vdwg.mxu0
        %1089 = vst [vmem:[%s270] sm:$0x1] %v1084
        %s1090 = sand.u32 %s141, 1
        %s1091 = scalar_lea.sflag [#allocation4], %s1090
        %s1092 = sand.u32 %s141, 1
        %s1093 = scalar_lea.vmem [#allocation8], %s1092
        // Predicated region
        $region53: #{tpu_custom_call.1} parent=39 // pred_check
          %p1094 = pneg %p151
        $region54: #{tpu_custom_call.1} parent=39 // pred_check_branch
          %1096 = sbr.rel (%p1094) target = $region56
        $region55: #{tpu_custom_call.1} parent=39 // pred_region
          %s1098 = ssub.s32 16, 16
          %1099 = vsyncadd %s1091, %s1098
          %s1100 = smul.addr %s23, 16
          %s1101 = scalar_lea.hbm %s5, %s1100
          %s1103 = sshll.u32 %s1093, 4
          %s1104 = int_to_ptr.vmem [resolvable:$true] %s1103
          %1106 = dma.vmem_to_hbm [thread:$0]  %s1104, 16, %s1101, %s1091
        $region56: #{tpu_custom_call.1} parent=39 // pred_fallthru
          _
      $region40: #{tpu_custom_call.1} parent=5 // pred_fallthru
        _
      %p1107 = scmp.le.s32.totalorder 2, %s18
      // Predicated region
      $region57: #{tpu_custom_call.1} parent=5 // pred_check
        %p1108 = pneg %p1107
      $region58: #{tpu_custom_call.1} parent=5 // pred_check_branch
        %1110 = sbr.rel (%p1108) target = $region60
      $region59: #{tpu_custom_call.1} parent=5 // pred_region
        %s1111 = ssub.s32 %s18, 2
        // Predicated region
        $region61: #{tpu_custom_call.1} parent=59 // pred_check
          %p1112 = pneg %p157
        $region62: #{tpu_custom_call.1} parent=59 // pred_check_branch
          %1114 = sbr.rel (%p1112) target = $region64
        $region63: #{tpu_custom_call.1} parent=59 // pred_region
          %s1115 = sand.u32 %s142, 1
          %s1116 = scalar_lea.sflag [#allocation4], %s1115
          %s1117 = sand.u32 %s142, 1
          %s1118 = scalar_lea.vmem [#allocation8], %s1117
          %1119 = dma.done %s1116, 16
        $region64: #{tpu_custom_call.1} parent=59 // pred_fallthru
          _
      $region60: #{tpu_custom_call.1} parent=5 // pred_fallthru
        _
    $region6: #{tpu_custom_call.1} parent=1 // loop_footer
      %s22 = sadd.s32 1, %s18
    $region7: #{tpu_custom_call.1} parent=1 // loop_footer_branch
      %17 = sbr.rel target = $region3
    $region8: #{tpu_custom_call.1} parent=1 // loop_exit
      _
    %1120 = vsyncpa [#allocation3], 1
    %s1121 = scalar_lea.sflag [#allocation3], 1
    %1122 = vsyncpa %s1121, 1
    %1123 = vsyncpa [#allocation6], 1
    %1124 = vsyncpa [#allocation4], 1
    %s1125 = scalar_lea.sflag [#allocation4], 1
    %1126 = vsyncpa %s1125, 1

</llo_original>
